<compile_context>
chip_gen: v7x
topology: tpu7x:2x2x1
jax: 0.10.0
libtpu: 0.0.40
codegen_flags: <defaults>
</compile_context>

<pallas_src>
import functools

import jax
import jax.numpy as jnp
from jax import lax
from jax.experimental import pallas as pl
from jax.experimental.pallas import tpu as pltpu


def _round_up(x, m):
    return ((x + m - 1) // m) * m


def _num_tensorcores():
    """2 on v7x (sharded over 'parallel' grid axes), 1 on v5e/v6e."""
    try:
        kind = jax.devices()[0].device_kind.lower()
    except Exception:
        return 1
    return 2 if ("v7" in kind or "7x" in kind) else 1


def _vmem_capacity_bytes():
    try:
        return int(pltpu.get_tpu_info().vmem_capacity_bytes)
    except Exception:
        return 64 << 20  # conservative fallback (v7x); v5e/v6e have 128 MiB.


def _choose_bm(batch, block_m, n_cores):
    """Row tile: whole batch in one block, or a multiple of 128 rows."""
    split_for_cores = n_cores > 1 and batch >= n_cores * 128
    if batch <= block_m and not split_for_cores:
        # Single full-batch block: full-dim block shapes are always legal and
        # there is no padding / no partial block at all.
        return batch
    # Multiple of 128 rows -> lane-dense transposed output stores, and also a
    # multiple of the 16/32-row sublane packing for bf16/int8 compute dtypes.
    bm = max(128, (block_m // 128) * 128)
    if split_for_cores:
        # Keep at least n_cores grid steps so both v7x TensorCores get work.
        bm = min(bm, _round_up(-(-batch // n_cores), 128))
    if bm >= batch:
        return batch
    return bm


def mlp_kernel(x_ref, w1_ref, b1_ref, w2t_ref, b2_ref, o_ref):
    # fc1: (bm, in) @ (in, hid) -> (bm, hid); f32 accumulation on the MXU.
    h = jnp.dot(x_ref[...], w1_ref[...], preferred_element_type=jnp.float32)
    # Bias + ReLU stay in f32 on the VPU (v5e has no bf16 VPU arithmetic).
    h = jnp.maximum(h + b1_ref[...], 0.0)
    # fc2 emitted directly transposed:  yT[o, m] = sum_k W2T[o, k] * h[m, k]
    # (rhs-transposed contraction, the q @ k.T pattern), so the store is a
    # lane-dense (output_dim, bm) block instead of a 1-wide masked column.
    y_t = lax.dot_general(
        w2t_ref[...], h.astype(w2t_ref.dtype),
        dimension_numbers=(((1,), (1,)), ((), ())),
        preferred_element_type=jnp.float32)
    o_ref[...] = (y_t + b2_ref[...]).astype(o_ref.dtype)


@functools.partial(jax.jit, static_argnames=("block_m", "compute_dtype"))
def custom_mlp_forward(x, w1, b1, w2, b2, *, block_m=1024, compute_dtype=None):
    batch, input_dim = x.shape
    hidden_dim = w1.shape[1]
    output_dim = w2.shape[1]
    out_dtype = x.dtype
    cdt = jnp.dtype(compute_dtype) if compute_dtype is not None else jnp.dtype(x.dtype)
    csize = cdt.itemsize
    osize = jnp.dtype(out_dtype).itemsize

    n_cores = _num_tensorcores()
    bm = _choose_bm(batch, block_m, n_cores)
    grid = (pl.cdiv(batch, bm),)

    # Operands: x / W1 / W2 in the compute dtype, biases in f32.
    # W2 is pre-transposed to (output_dim, hidden_dim) so the kernel can write
    # the fc2 result already transposed (lane-dense over batch rows).  In real
    # use the weights would be stored pre-transposed; this is a tiny one-time op.
    x_c = x.astype(cdt)
    w1_c = w1.astype(cdt)
    w2t_c = jnp.transpose(w2).astype(cdt)                 # (output_dim, hidden_dim)
    b1_r = b1.reshape(1, hidden_dim).astype(jnp.float32)  # (1, hidden_dim)
    b2_r = b2.reshape(output_dim, 1).astype(jnp.float32)  # (output_dim, 1)

    # Tight VMEM budget: resident weights/biases counted ONCE (constant
    # index_map blocks are revisited, not re-fetched), double-buffered x / out
    # streams, f32 intermediates, plus headroom; capped below the chip's VMEM
    # (64 MiB on v7x, 128 MiB on v5e/v6e).  No artificial 32 MiB floor.
    weight_bytes = (w1_c.size + w2t_c.size) * csize + (b1_r.size + b2_r.size) * 4
    stream_bytes = 2 * (bm * input_dim * csize + output_dim * bm * osize)
    scratch_bytes = bm * hidden_dim * 4 + output_dim * bm * 4
    est = weight_bytes + stream_bytes + scratch_bytes
    vmem_cap = _vmem_capacity_bytes()
    vmem_limit = int(min(est + (8 << 20), int(0.85 * vmem_cap)))
    # TODO(synk): if the weights ever stop being resident (est > ~0.5*vmem_cap,
    # reached at half the v5e/v6e size on v7x), add an "arbitrary" grid axis
    # over hidden_dim with an f32 accumulator scratch and pl.when init/finalize.

    flops = 2 * batch * (input_dim * hidden_dim + hidden_dim * output_dim)
    bytes_accessed = int(x_c.size * csize + weight_bytes
                         + batch * output_dim * osize)

    out_t = pl.pallas_call(
        mlp_kernel,
        out_shape=jax.ShapeDtypeStruct((output_dim, batch), out_dtype),
        grid_spec=pltpu.PrefetchScalarGridSpec(
            num_scalar_prefetch=0,
            grid=grid,
            in_specs=[
                # x: one block of rows per grid step (partial tail is masked).
                pl.BlockSpec((bm, input_dim), lambda i: (i, 0)),
                # Weights / biases: full arrays, resident across the grid.
                pl.BlockSpec((input_dim, hidden_dim), lambda i: (0, 0)),
                pl.BlockSpec((1, hidden_dim), lambda i: (0, 0)),
                pl.BlockSpec((output_dim, hidden_dim), lambda i: (0, 0)),
                pl.BlockSpec((output_dim, 1), lambda i: (0, 0)),
            ],
            # Transposed, lane-dense output: (output_dim, batch) in HBM.
            out_specs=pl.BlockSpec((output_dim, bm), lambda i: (0, i)),
        ),
        compiler_params=pltpu.CompilerParams(
            dimension_semantics=("parallel",),
            vmem_limit_bytes=vmem_limit),
        cost_estimate=pl.CostEstimate(
            flops=flops, transcendentals=0, bytes_accessed=bytes_accessed),
    )(x_c, w1_c, b1_r, w2t_c, b2_r)

    # (output_dim, batch) -> (batch, output_dim); for output_dim == 1 this is
    # just a reshape (no data movement).
    return out_t.T


def init_params(key, input_dim, hidden_dim, output_dim, dtype=jnp.float32):
    """Deterministic init mimicking nn.Linear default U[-1/sqrt(fan_in), 1/sqrt(fan_in)]."""
    k1, k2, k3, k4 = jax.random.split(key, 4)
    bound1 = 1.0 / jnp.sqrt(input_dim)
    bound2 = 1.0 / jnp.sqrt(hidden_dim)
    # Stored as (in, out) so the forward is x @ W (PyTorch stores (out, in)).
    w1 = jax.random.uniform(k1, (input_dim, hidden_dim), dtype, -bound1, bound1)
    b1 = jax.random.uniform(k2, (1, hidden_dim), dtype, -bound1, bound1)
    w2 = jax.random.uniform(k3, (hidden_dim, output_dim), dtype, -bound2, bound2)
    b2 = jax.random.uniform(k4, (1, output_dim), dtype, -bound2, bound2)
    return w1, b1, w2, b2


def reference_forward(x, w1, b1, w2, b2):
    hi = jax.lax.Precision.HIGHEST
    h = jnp.maximum(jnp.dot(x, w1, precision=hi) + b1, 0.0)
    return jnp.dot(h, w2, precision=hi) + b2


if __name__ == "__main__":
    # Small binary-classification-style shapes: (batch, input_dim) -> hidden -> 1.
    batch, input_dim, hidden_dim, output_dim = 200, 32, 64, 1

    key = jax.random.PRNGKey(0)
    kx, kx2, kp = jax.random.split(key, 3)
    x = jax.random.normal(kx, (batch, input_dim), jnp.float32)
    w1, b1, w2, b2 = init_params(kp, input_dim, hidden_dim, output_dim)
    ref = reference_forward(x, w1, b1, w2, b2)

    # Default config: whole batch in one row tile (single grid step, no padding).
    out = jax.block_until_ready(custom_mlp_forward(x, w1, b1, w2, b2))
    assert out.shape == (batch, output_dim)
    assert jnp.allclose(out, ref, atol=1e-4, rtol=1e-4), "f32 mismatch vs reference"

    # Multi-step grid with a partial tail block (exercises cdiv grid + masked
    # partial last block, and >=2 'parallel' steps for both v7x TensorCores).
    x2 = jax.random.normal(kx2, (1000, input_dim), jnp.float32)
    ref2 = reference_forward(x2, w1, b1, w2, b2)
    out2 = jax.block_until_ready(
        custom_mlp_forward(x2, w1, b1, w2, b2, block_m=256))
    assert out2.shape == (1000, output_dim)
    assert jnp.allclose(out2, ref2, atol=1e-4, rtol=1e-4), "tiled f32 mismatch"

    # Optional bf16 compute path (f32 MXU accumulation), looser tolerance.
    out_bf16 = jax.block_until_ready(
        custom_mlp_forward(x, w1, b1, w2, b2, compute_dtype=jnp.bfloat16))
    assert jnp.allclose(out_bf16, ref, atol=5e-2, rtol=5e-2), "bf16 path mismatch"

    print("KERNEL_OK")
</pallas_src>

<mosaic_0001>
module attributes {stable_mosaic.version = 11 : i64} {
  func.func @mlp_kernel(%arg0: i32, %arg1: memref<200x32xf32, #tpu.memory_space<vmem>>, %arg2: memref<32x64xf32, #tpu.memory_space<vmem>>, %arg3: memref<1x64xf32, #tpu.memory_space<vmem>>, %arg4: memref<1x64xf32, #tpu.memory_space<vmem>>, %arg5: memref<1x1xf32, #tpu.memory_space<vmem>>, %arg6: memref<1x200xf32, #tpu.memory_space<vmem>>) attributes {dimension_semantics = [#tpu.dimension_semantics<parallel>], iteration_bounds = array<i64: 1>, scalar_prefetch = 0 : i64, scratch_operands = 0 : i64, tpu.core_type = #tpu.core_type<tc>, window_params = [{transform_indices = @transform_0, window_bounds = array<i64: 200, 32>}, {pipeline_mode = #tpu.pipeline_mode<synchronous>, transform_indices = @transform_1, window_bounds = array<i64: 32, 64>}, {pipeline_mode = #tpu.pipeline_mode<synchronous>, transform_indices = @transform_2, window_bounds = array<i64: 1, 64>}, {pipeline_mode = #tpu.pipeline_mode<synchronous>, transform_indices = @transform_3, window_bounds = array<i64: 1, 64>}, {pipeline_mode = #tpu.pipeline_mode<synchronous>, transform_indices = @transform_4, window_bounds = array<i64: 1, 1>}, {transform_indices = @transform_5, window_bounds = array<i64: 1, 200>}]} {
    %c0 = arith.constant 0 : index
    %c0_0 = arith.constant 0 : index
    %0 = vector.load %arg1[%c0, %c0_0] : memref<200x32xf32, #tpu.memory_space<vmem>>, vector<200x32xf32>
    %c0_1 = arith.constant 0 : index
    %c0_2 = arith.constant 0 : index
    %1 = vector.load %arg2[%c0_1, %c0_2] : memref<32x64xf32, #tpu.memory_space<vmem>>, vector<32x64xf32>
    %cst = arith.constant dense<0.000000e+00> : vector<200x64xf32>
    %2 = tpu.matmul %0, %1, %cst {dimension_numbers = #tpu.dot_dimension_numbers<[1], [0], [0], [1], [0, 0, 1, 1], [], []>} : vector<200x32xf32>, vector<32x64xf32>, vector<200x64xf32> -> vector<200x64xf32>
    %c0_3 = arith.constant 0 : index
    %c0_4 = arith.constant 0 : index
    %3 = vector.load %arg3[%c0_3, %c0_4] : memref<1x64xf32, #tpu.memory_space<vmem>>, vector<1x64xf32>
    %4 = vector.broadcast %3 : vector<1x64xf32> to vector<200x64xf32>
    %5 = arith.addf %2, %4 : vector<200x64xf32>
    %cst_5 = arith.constant 0.000000e+00 : f32
    %6 = vector.broadcast %cst_5 : f32 to vector<200x64xf32>
    %7 = arith.maximumf %5, %6 : vector<200x64xf32>
    %c0_6 = arith.constant 0 : index
    %c0_7 = arith.constant 0 : index
    %8 = vector.load %arg4[%c0_6, %c0_7] : memref<1x64xf32, #tpu.memory_space<vmem>>, vector<1x64xf32>
    %cst_8 = arith.constant dense<0.000000e+00> : vector<1x200xf32>
    %9 = tpu.matmul %8, %7, %cst_8 {dimension_numbers = #tpu.dot_dimension_numbers<[1], [1], [0], [0], [0, 0, 1, 0], [], []>} : vector<1x64xf32>, vector<200x64xf32>, vector<1x200xf32> -> vector<1x200xf32>
    %c0_9 = arith.constant 0 : index
    %c0_10 = arith.constant 0 : index
    %10 = vector.load %arg5[%c0_9, %c0_10] : memref<1x1xf32, #tpu.memory_space<vmem>>, vector<1x1xf32>
    %11 = vector.broadcast %10 : vector<1x1xf32> to vector<1x200xf32>
    %12 = arith.addf %9, %11 : vector<1x200xf32>
    %c0_11 = arith.constant 0 : index
    %c0_12 = arith.constant 0 : index
    %13 = vector.load %arg6[%c0_11, %c0_12] : memref<1x200xf32, #tpu.memory_space<vmem>>, vector<1x200xf32>
    tpu.vector_store %arg6[%c0_11, %c0_12], %12 {strides = array<i32>} : memref<1x200xf32, #tpu.memory_space<vmem>>, vector<1x200xf32>,
    return
  }
  func.func @transform_0(%arg0: i32) -> (i32, i32) {
    %c0_i32 = arith.constant 0 : i32
    %c0_i32_0 = arith.constant 0 : i32
    return %arg0, %c0_i32 : i32, i32
  }
  func.func @transform_1(%arg0: i32) -> (i32, i32) {
    %c0_i32 = arith.constant 0 : i32
    %c0_i32_0 = arith.constant 0 : i32
    %c0_i32_1 = arith.constant 0 : i32
    return %c0_i32, %c0_i32_0 : i32, i32
  }
  func.func @transform_2(%arg0: i32) -> (i32, i32) {
    %c0_i32 = arith.constant 0 : i32
    %c0_i32_0 = arith.constant 0 : i32
    %c0_i32_1 = arith.constant 0 : i32
    return %c0_i32, %c0_i32_0 : i32, i32
  }
  func.func @transform_3(%arg0: i32) -> (i32, i32) {
    %c0_i32 = arith.constant 0 : i32
    %c0_i32_0 = arith.constant 0 : i32
    %c0_i32_1 = arith.constant 0 : i32
    return %c0_i32, %c0_i32_0 : i32, i32
  }
  func.func @transform_4(%arg0: i32) -> (i32, i32) {
    %c0_i32 = arith.constant 0 : i32
    %c0_i32_0 = arith.constant 0 : i32
    %c0_i32_1 = arith.constant 0 : i32
    return %c0_i32, %c0_i32_0 : i32, i32
  }
  func.func @transform_5(%arg0: i32) -> (i32, i32) {
    %c0_i32 = arith.constant 0 : i32
    %c0_i32_0 = arith.constant 0 : i32
    return %c0_i32, %arg0 : i32, i32
  }
}

</mosaic_0001>

<llo_original>
// kernel: custom_mlp_forward.1
$region0: #{custom_mlp_forward.1}
  #allocation0 [shape = 'u32[]', space=smem, size = 0x4, offset = 0x4, fixed_abs, tag = 'smem constant byte address 0x4 - core index']
  #allocation1 [shape = 'u32[144,128]{1,0:T(1,128)}', space=vmem, size = 0x12000, scoped, tag = 'internal scratch']
  #allocation2 [shape = 'f32[1,1]{1,0:T(1,128)S(1)}', space=vmem, size = 0x200, scoped, tag = 'scoped memory for custom_mlp_forward.1']
  %s0 = inlined_call_operand.vmem [shape: f32[200,32], index: 0, kind: input, shape index: {}]
  %s1 = inlined_call_operand.vmem [shape: f32[32,64], index: 1, kind: input, shape index: {}]
  %s2 = inlined_call_operand.vmem [shape: f32[1,64], index: 2, kind: input, shape index: {}]
  %s3 = inlined_call_operand.vmem [shape: f32[1,64], index: 3, kind: input, shape index: {}]
  %s4 = inlined_call_operand.<no memory space> [shape: f32[1,1], index: 4, kind: input, shape index: {}]
  %s5 = inlined_call_operand.hbm [shape: f32[1,200], index: 5, kind: output, shape index: {}]
  %s6 = sld [smem:[#allocation0]]
  $region30: #{custom_mlp_forward.1} parent=0
    _
  %s8 = ssub.s32 1, %s6
  %s9 = scalar_select 0, %s8, %s6
  %v10 = vstv %s4
  %11 = vst [vmem:[#allocation2] sm:$0x1] %v10
  $region1: #{custom_mlp_forward.1} parent=0
    #allocation3 [shape = 'u8[1024]{0}', space=vmem, size = 0x400, scoped, tag = 'output window, operand 0, single buffered']
    #allocation4 [shape = 's32[1]{0}', space=sflag, size = 0x4, scoped, tag = 'scoped memory for custom_mlp_forward.1']
    %12 = vsyncpa [#allocation4], 0
    // Predicated region
    $region2: #{custom_mlp_forward.1} parent=1 // pred_check
      _
    $region3: #{custom_mlp_forward.1} parent=1 // pred_check_branch
      %14 = sbr.rel (0) target = $region5
    $region4: #{custom_mlp_forward.1} parent=1 // pred_region
      _
    $region5: #{custom_mlp_forward.1} parent=1 // pred_fallthru
      _
    // Predicated region
    $region6: #{custom_mlp_forward.1} parent=1 // pred_check
      _
    $region7: #{custom_mlp_forward.1} parent=1 // pred_check_branch
      %16 = sbr.rel (0) target = $region9
    $region8: #{custom_mlp_forward.1} parent=1 // pred_region
      _
    $region9: #{custom_mlp_forward.1} parent=1 // pred_fallthru
      _
    // Predicated region
    $region10: #{custom_mlp_forward.1} parent=1 // pred_check
      _
    $region11: #{custom_mlp_forward.1} parent=1 // pred_check_branch
      %18 = sbr.rel (0) target = $region13
    $region12: #{custom_mlp_forward.1} parent=1 // pred_region
      _
    $region13: #{custom_mlp_forward.1} parent=1 // pred_fallthru
      _
    // Predicated region
    $region14: #{custom_mlp_forward.1} parent=1 // pred_check
      _
    $region15: #{custom_mlp_forward.1} parent=1 // pred_check_branch
      %20 = sbr.rel (0) target = $region17
    $region16: #{custom_mlp_forward.1} parent=1 // pred_region
      _
    $region17: #{custom_mlp_forward.1} parent=1 // pred_fallthru
      _
    // Predicated region
    $region18: #{custom_mlp_forward.1} parent=1 // pred_check
      _
    $region19: #{custom_mlp_forward.1} parent=1 // pred_check_branch
      %22 = sbr.rel (0) target = $region21
    $region20: #{custom_mlp_forward.1} parent=1 // pred_region
      _
    $region21: #{custom_mlp_forward.1} parent=1 // pred_fallthru
      _
    %v23 = vld [vmem:[%s0] sm:$0xff]
    %v24 = vld [vmem:[%s0 + $0x8] sm:$0xff]
    %v25 = vld [vmem:[%s0 + $0x10] sm:$0xff]
    %v26 = vld [vmem:[%s0 + $0x18] sm:$0xff]
    %v27 = vld [vmem:[%s0 + $0x20] sm:$0xff]
    %v28 = vld [vmem:[%s0 + $0x28] sm:$0xff]
    %v29 = vld [vmem:[%s0 + $0x30] sm:$0xff]
    %v30 = vld [vmem:[%s0 + $0x38] sm:$0xff]
    %v31 = vld [vmem:[%s0 + $0x40] sm:$0xff]
    %v32 = vld [vmem:[%s0 + $0x48] sm:$0xff]
    %v33 = vld [vmem:[%s0 + $0x50] sm:$0xff]
    %v34 = vld [vmem:[%s0 + $0x58] sm:$0xff]
    %v35 = vld [vmem:[%s0 + $0x60] sm:$0xff]
    %v36 = vld [vmem:[%s0 + $0x68] sm:$0xff]
    %v37 = vld [vmem:[%s0 + $0x70] sm:$0xff]
    %v38 = vld [vmem:[%s0 + $0x78] sm:$0xff]
    %v39 = vld [vmem:[%s0 + $0x80] sm:$0xff]
    %v40 = vld [vmem:[%s0 + $0x88] sm:$0xff]
    %v41 = vld [vmem:[%s0 + $0x90] sm:$0xff]
    %v42 = vld [vmem:[%s0 + $0x98] sm:$0xff]
    %v43 = vld [vmem:[%s0 + $0xa0] sm:$0xff]
    %v44 = vld [vmem:[%s0 + $0xa8] sm:$0xff]
    %v45 = vld [vmem:[%s0 + $0xb0] sm:$0xff]
    %v46 = vld [vmem:[%s0 + $0xb8] sm:$0xff]
    %v47 = vld [vmem:[%s0 + $0xc0] sm:$0xff]
    %v48 = vld [vmem:[%s1] sm:$0xff]
    %v49 = vld [vmem:[%s1 + $0x8] sm:$0xff]
    %v50 = vld [vmem:[%s1 + $0x10] sm:$0xff]
    %v51 = vld [vmem:[%s1 + $0x18] sm:$0xff]
    %v52 = vld [vmem:[%s2] sm:$0x1]
    %v54 = vlaneseq
    %v55 = vshrl.u32 %v54, 7
    %v56 = vsub.s32 0, %v55
    %v57 = vrot.slane %v52, %v56
    %vm59 = vcmask 261120
    %v61 = vsel %vm59, %v23, 0
    %v64 = vsel %vm59, %v24, 0
    %v67 = vsel %vm59, %v25, 0
    %v70 = vsel %vm59, %v26, 0
    %v73 = vsel %vm59, %v27, 0
    %v76 = vsel %vm59, %v28, 0
    %v79 = vsel %vm59, %v29, 0
    %v82 = vsel %vm59, %v30, 0
    %v85 = vsel %vm59, %v31, 0
    %v88 = vsel %vm59, %v32, 0
    %v91 = vsel %vm59, %v33, 0
    %v94 = vsel %vm59, %v34, 0
    %v97 = vsel %vm59, %v35, 0
    %v100 = vsel %vm59, %v36, 0
    %v103 = vsel %vm59, %v37, 0
    %v106 = vsel %vm59, %v38, 0
    %v109 = vsel %vm59, %v39, 0
    %v112 = vsel %vm59, %v40, 0
    %v115 = vsel %vm59, %v41, 0
    %v118 = vsel %vm59, %v42, 0
    %v121 = vsel %vm59, %v43, 0
    %v124 = vsel %vm59, %v44, 0
    %v127 = vsel %vm59, %v45, 0
    %v130 = vsel %vm59, %v46, 0
    %v133 = vsel %vm59, %v47, 0
    %135 = vmatprep.subr.mxu0 0.0
    %136 = vmatpush1.msra.mxu0 %v48
    %137 = vmatprep.subr.mxu0 0.0
    %138 = vmatpush1.msra.mxu0 %v49
    %139 = vmatprep.subr.mxu0 0.0
    %140 = vmatpush1.msra.mxu0 %v50
    %141 = vmatprep.subr.mxu0 0.0
    %142 = vmatpush1.msra.mxu0 %v51
    %143 = vmatprep.subr.mxu0 0.0
    %144 = vmatpush1.msra.mxu0 0.0
    %145 = vmatprep.subr.mxu0 0.0
    %146 = vmatpush1.msra.mxu0 0.0
    %147 = vmatprep.subr.mxu0 0.0
    %148 = vmatpush1.msra.mxu0 0.0
    %149 = vmatprep.subr.mxu0 0.0
    %150 = vmatpush1.msra.mxu0 0.0
    %151 = vmatprep.subr.mxu0 0.0
    %152 = vmatpush1.msra.mxu0 0.0
    %153 = vmatprep.subr.mxu0 0.0
    %154 = vmatpush1.msra.mxu0 0.0
    %155 = vmatprep.subr.mxu0 0.0
    %156 = vmatpush1.msra.mxu0 0.0
    %157 = vmatprep.subr.mxu0 0.0
    %158 = vmatpush1.msra.mxu0 0.0
    %159 = vmatprep.subr.mxu0 0.0
    %160 = vmatpush1.msra.mxu0 0.0
    %161 = vmatprep.subr.mxu0 0.0
    %162 = vmatpush1.msra.mxu0 0.0
    %163 = vmatprep.subr.mxu0 0.0
    %164 = vmatpush1.msra.mxu0 0.0
    %165 = vmatprep.subr.mxu0 0.0
    %166 = vmatpush1.msra.mxu0 0.0
    %167 = vmatprep.subr.mxu0 0.0
    %168 = vmatpush1.msra.mxu0 0.0
    %169 = vmatprep.subr.mxu0 0.0
    %170 = vmatpush1.msra.mxu0 0.0
    %171 = vmatprep.subr.mxu0 0.0
    %172 = vmatpush1.msra.mxu0 0.0
    %173 = vmatprep.subr.mxu0 0.0
    %174 = vmatpush1.msra.mxu0 0.0
    %175 = vmatprep.subr.mxu0 0.0
    %176 = vmatpush1.msra.mxu0 0.0
    %177 = vmatprep.subr.mxu0 0.0
    %178 = vmatpush1.msra.mxu0 0.0
    %179 = vmatprep.subr.mxu0 0.0
    %180 = vmatpush1.msra.mxu0 0.0
    %181 = vmatprep.subr.mxu0 0.0
    %182 = vmatpush1.msra.mxu0 0.0
    %183 = vmatprep.subr.mxu0 0.0
    %184 = vmatpush1.msra.mxu0 0.0
    %185 = vmatprep.subr.mxu0 0.0
    %186 = vmatpush1.msra.mxu0 0.0
    %187 = vmatprep.subr.mxu0 0.0
    %188 = vmatpush1.msra.mxu0 0.0
    %189 = vmatprep.subr.mxu0 0.0
    %190 = vmatpush1.msra.mxu0 0.0
    %191 = vmatprep.subr.mxu0 0.0
    %192 = vmatpush1.msra.mxu0 0.0
    %193 = vmatprep.subr.mxu0 0.0
    %194 = vmatpush1.msra.mxu0 0.0
    %195 = vmatprep.subr.mxu0 0.0
    %196 = vmatpush1.msra.mxu0 0.0
    %197 = vmatprep.subr.mxu0 0.0
    %198 = vmatpush1.msra.mxu0 0.0
    %199 = vmatprep.mubr.f32.mxu0 0.0
    %200 = vmatmul.mubr.f32.gmra.mrb[0].mxu0 %v61
    %v201 = vpop.f32.mrb[0].mxu0
    %v202 = vadd.f32 %v57, %v201
    %v203 = vpop.f32.mrb[0].mxu0
    %204 = vmatprep.mubr.f32.mxu0 0.0
    %205 = vmatmul.mubr.f32.gmra.mrb[0].mxu0 %v64
    %v206 = vpop.f32.mrb[0].mxu0
    %v207 = vadd.f32 %v57, %v206
    %v208 = vpop.f32.mrb[0].mxu0
    %209 = vmatprep.mubr.f32.mxu0 0.0
    %210 = vmatmul.mubr.f32.gmra.mrb[0].mxu0 %v67
    %v211 = vpop.f32.mrb[0].mxu0
    %v212 = vadd.f32 %v57, %v211
    %v213 = vpop.f32.mrb[0].mxu0
    %214 = vmatprep.mubr.f32.mxu0 0.0
    %215 = vmatmul.mubr.f32.gmra.mrb[0].mxu0 %v70
    %v216 = vpop.f32.mrb[0].mxu0
    %v217 = vadd.f32 %v57, %v216
    %v218 = vpop.f32.mrb[0].mxu0
    %219 = vmatprep.mubr.f32.mxu0 0.0
    %220 = vmatmul.mubr.f32.gmra.mrb[0].mxu0 %v73
    %v221 = vpop.f32.mrb[0].mxu0
    %v222 = vadd.f32 %v57, %v221
    %v223 = vpop.f32.mrb[0].mxu0
    %224 = vmatprep.mubr.f32.mxu0 0.0
    %225 = vmatmul.mubr.f32.gmra.mrb[0].mxu0 %v76
    %v226 = vpop.f32.mrb[0].mxu0
    %v227 = vadd.f32 %v57, %v226
    %v228 = vpop.f32.mrb[0].mxu0
    %229 = vmatprep.mubr.f32.mxu0 0.0
    %230 = vmatmul.mubr.f32.gmra.mrb[0].mxu0 %v79
    %v231 = vpop.f32.mrb[0].mxu0
    %v232 = vadd.f32 %v57, %v231
    %v233 = vpop.f32.mrb[0].mxu0
    %234 = vmatprep.mubr.f32.mxu0 0.0
    %235 = vmatmul.mubr.f32.gmra.mrb[0].mxu0 %v82
    %v236 = vpop.f32.mrb[0].mxu0
    %v237 = vadd.f32 %v57, %v236
    %v238 = vpop.f32.mrb[0].mxu0
    %239 = vmatprep.mubr.f32.mxu0 0.0
    %240 = vmatmul.mubr.f32.gmra.mrb[0].mxu0 %v85
    %v241 = vpop.f32.mrb[0].mxu0
    %v242 = vadd.f32 %v57, %v241
    %v243 = vpop.f32.mrb[0].mxu0
    %244 = vmatprep.mubr.f32.mxu0 0.0
    %245 = vmatmul.mubr.f32.gmra.mrb[0].mxu0 %v88
    %v246 = vpop.f32.mrb[0].mxu0
    %v247 = vadd.f32 %v57, %v246
    %v248 = vpop.f32.mrb[0].mxu0
    %249 = vmatprep.mubr.f32.mxu0 0.0
    %250 = vmatmul.mubr.f32.gmra.mrb[0].mxu0 %v91
    %v251 = vpop.f32.mrb[0].mxu0
    %v252 = vadd.f32 %v57, %v251
    %v253 = vpop.f32.mrb[0].mxu0
    %254 = vmatprep.mubr.f32.mxu0 0.0
    %255 = vmatmul.mubr.f32.gmra.mrb[0].mxu0 %v94
    %v256 = vpop.f32.mrb[0].mxu0
    %v257 = vadd.f32 %v57, %v256
    %v258 = vpop.f32.mrb[0].mxu0
    %259 = vmatprep.mubr.f32.mxu0 0.0
    %260 = vmatmul.mubr.f32.gmra.mrb[0].mxu0 %v97
    %v261 = vpop.f32.mrb[0].mxu0
    %v262 = vadd.f32 %v57, %v261
    %v263 = vpop.f32.mrb[0].mxu0
    %264 = vmatprep.mubr.f32.mxu0 0.0
    %265 = vmatmul.mubr.f32.gmra.mrb[0].mxu0 %v100
    %v266 = vpop.f32.mrb[0].mxu0
    %v267 = vadd.f32 %v57, %v266
    %v268 = vpop.f32.mrb[0].mxu0
    %269 = vmatprep.mubr.f32.mxu0 0.0
    %270 = vmatmul.mubr.f32.gmra.mrb[0].mxu0 %v103
    %v271 = vpop.f32.mrb[0].mxu0
    %v272 = vadd.f32 %v57, %v271
    %v273 = vpop.f32.mrb[0].mxu0
    %274 = vmatprep.mubr.f32.mxu0 0.0
    %275 = vmatmul.mubr.f32.gmra.mrb[0].mxu0 %v106
    %v276 = vpop.f32.mrb[0].mxu0
    %v277 = vadd.f32 %v57, %v276
    %v278 = vpop.f32.mrb[0].mxu0
    %279 = vmatprep.mubr.f32.mxu0 0.0
    %280 = vmatmul.mubr.f32.gmra.mrb[0].mxu0 %v109
    %v281 = vpop.f32.mrb[0].mxu0
    %v282 = vadd.f32 %v57, %v281
    %v283 = vpop.f32.mrb[0].mxu0
    %284 = vmatprep.mubr.f32.mxu0 0.0
    %285 = vmatmul.mubr.f32.gmra.mrb[0].mxu0 %v112
    %v286 = vpop.f32.mrb[0].mxu0
    %v287 = vadd.f32 %v57, %v286
    %v288 = vpop.f32.mrb[0].mxu0
    %289 = vmatprep.mubr.f32.mxu0 0.0
    %290 = vmatmul.mubr.f32.gmra.mrb[0].mxu0 %v115
    %v291 = vpop.f32.mrb[0].mxu0
    %v292 = vadd.f32 %v57, %v291
    %v293 = vpop.f32.mrb[0].mxu0
    %294 = vmatprep.mubr.f32.mxu0 0.0
    %295 = vmatmul.mubr.f32.gmra.mrb[0].mxu0 %v118
    %v296 = vpop.f32.mrb[0].mxu0
    %v297 = vadd.f32 %v57, %v296
    %v298 = vpop.f32.mrb[0].mxu0
    %299 = vmatprep.mubr.f32.mxu0 0.0
    %300 = vmatmul.mubr.f32.gmra.mrb[0].mxu0 %v121
    %v301 = vpop.f32.mrb[0].mxu0
    %v302 = vadd.f32 %v57, %v301
    %v303 = vpop.f32.mrb[0].mxu0
    %304 = vmatprep.mubr.f32.mxu0 0.0
    %305 = vmatmul.mubr.f32.gmra.mrb[0].mxu0 %v124
    %v306 = vpop.f32.mrb[0].mxu0
    %v307 = vadd.f32 %v57, %v306
    %v308 = vpop.f32.mrb[0].mxu0
    %309 = vmatprep.mubr.f32.mxu0 0.0
    %310 = vmatmul.mubr.f32.gmra.mrb[0].mxu0 %v127
    %v311 = vpop.f32.mrb[0].mxu0
    %v312 = vadd.f32 %v57, %v311
    %v313 = vpop.f32.mrb[0].mxu0
    %314 = vmatprep.mubr.f32.mxu0 0.0
    %315 = vmatmul.mubr.f32.gmra.mrb[0].mxu0 %v130
    %v316 = vpop.f32.mrb[0].mxu0
    %v317 = vadd.f32 %v57, %v316
    %v318 = vpop.f32.mrb[0].mxu0
    %319 = vmatprep.mubr.f32.mxu0 0.0
    %320 = vmatmul.mubr.f32.gmra.mrb[0].mxu0 %v133
    %v321 = vpop.f32.mrb[0].mxu0
    %v322 = vadd.f32 %v57, %v321
    %v323 = vpop.f32.mrb[0].mxu0
    %324 = vdwg.mxu0
    %v325 = vmax.f32 %v202, 0.0
    %v326 = vmax.f32 %v207, 0.0
    %v327 = vmax.f32 %v212, 0.0
    %v328 = vmax.f32 %v217, 0.0
    %v329 = vmax.f32 %v222, 0.0
    %v330 = vmax.f32 %v227, 0.0
    %v331 = vmax.f32 %v232, 0.0
    %v332 = vmax.f32 %v237, 0.0
    %v333 = vmax.f32 %v242, 0.0
    %v334 = vmax.f32 %v247, 0.0
    %v335 = vmax.f32 %v252, 0.0
    %v336 = vmax.f32 %v257, 0.0
    %v337 = vmax.f32 %v262, 0.0
    %v338 = vmax.f32 %v267, 0.0
    %v339 = vmax.f32 %v272, 0.0
    %v340 = vmax.f32 %v277, 0.0
    %v341 = vmax.f32 %v282, 0.0
    %v342 = vmax.f32 %v287, 0.0
    %v343 = vmax.f32 %v292, 0.0
    %v344 = vmax.f32 %v297, 0.0
    %v345 = vmax.f32 %v302, 0.0
    %v346 = vmax.f32 %v307, 0.0
    %v347 = vmax.f32 %v312, 0.0
    %v348 = vmax.f32 %v317, 0.0
    %v349 = vmax.f32 %v322, 0.0
    %v350 = vld [vmem:[%s3] sm:$0x1]
    %v351 = vld [vmem:[#allocation2] sm:$0x1]
    %353 = vset.pattern.permute.xlu0 0
    %354 = vperm.xlu0 %353, %v351
    %v355 = vpop.permute.xlu0 %354
    %v357 = vlaneseq
    %v358 = vshrl.u32 %v357, 7
    %v359 = vsub.s32 0, %v358
    %v360 = vrot.slane %v355, %v359
    %vm361 = vcmask 523264
    %v363 = vsel %vm361, %v350, 0
    %v366 = vsel %vm361, %v325, 0
    %v369 = vsel %vm361, %v326, 0
    %v372 = vsel %vm361, %v327, 0
    %v375 = vsel %vm361, %v328, 0
    %v378 = vsel %vm361, %v329, 0
    %v381 = vsel %vm361, %v330, 0
    %v384 = vsel %vm361, %v331, 0
    %v387 = vsel %vm361, %v332, 0
    %v390 = vsel %vm361, %v333, 0
    %v393 = vsel %vm361, %v334, 0
    %v396 = vsel %vm361, %v335, 0
    %v399 = vsel %vm361, %v336, 0
    %v402 = vsel %vm361, %v337, 0
    %v405 = vsel %vm361, %v338, 0
    %v408 = vsel %vm361, %v339, 0
    %v411 = vsel %vm361, %v340, 0
    %v414 = vsel %vm361, %v341, 0
    %v417 = vsel %vm361, %v342, 0
    %v420 = vsel %vm361, %v343, 0
    %v423 = vsel %vm361, %v344, 0
    %v426 = vsel %vm361, %v345, 0
    %v429 = vsel %vm361, %v346, 0
    %v432 = vsel %vm361, %v347, 0
    %v435 = vsel %vm361, %v348, 0
    %v438 = vsel %vm361, %v349, 0
    %440 = vmatprep.subr.mxu0 0.0
    %441 = vmatpush1.xpose.msra.mxu0 %v366
    %442 = vmatprep.subr.mxu0 0.0
    %443 = vmatpush1.xpose.msra.mxu0 %v369
    %444 = vmatprep.subr.mxu0 0.0
    %445 = vmatpush1.xpose.msra.mxu0 %v372
    %446 = vmatprep.subr.mxu0 0.0
    %447 = vmatpush1.xpose.msra.mxu0 %v375
    %448 = vmatprep.subr.mxu0 0.0
    %449 = vmatpush1.xpose.msra.mxu0 %v378
    %450 = vmatprep.subr.mxu0 0.0
    %451 = vmatpush1.xpose.msra.mxu0 %v381
    %452 = vmatprep.subr.mxu0 0.0
    %453 = vmatpush1.xpose.msra.mxu0 %v384
    %454 = vmatprep.subr.mxu0 0.0
    %455 = vmatpush1.xpose.msra.mxu0 %v387
    %456 = vmatprep.subr.mxu0 0.0
    %457 = vmatpush1.xpose.msra.mxu0 %v390
    %458 = vmatprep.subr.mxu0 0.0
    %459 = vmatpush1.xpose.msra.mxu0 %v393
    %460 = vmatprep.subr.mxu0 0.0
    %461 = vmatpush1.xpose.msra.mxu0 %v396
    %462 = vmatprep.subr.mxu0 0.0
    %463 = vmatpush1.xpose.msra.mxu0 %v399
    %464 = vmatprep.subr.mxu0 0.0
    %465 = vmatpush1.xpose.msra.mxu0 %v402
    %466 = vmatprep.subr.mxu0 0.0
    %467 = vmatpush1.xpose.msra.mxu0 %v405
    %468 = vmatprep.subr.mxu0 0.0
    %469 = vmatpush1.xpose.msra.mxu0 %v408
    %470 = vmatprep.subr.mxu0 0.0
    %471 = vmatpush1.xpose.msra.mxu0 %v411
    %472 = vmatprep.subr.mxu0 0.0
    %473 = vmatpush1.xpose.msra.mxu0 %v414
    %474 = vmatprep.subr.mxu0 0.0
    %475 = vmatpush1.xpose.msra.mxu0 %v417
    %476 = vmatprep.subr.mxu0 0.0
    %477 = vmatpush1.xpose.msra.mxu0 %v420
    %478 = vmatprep.subr.mxu0 0.0
    %479 = vmatpush1.xpose.msra.mxu0 %v423
    %480 = vmatprep.subr.mxu0 0.0
    %481 = vmatpush1.xpose.msra.mxu0 %v426
    %482 = vmatprep.subr.mxu0 0.0
    %483 = vmatpush1.xpose.msra.mxu0 %v429
    %484 = vmatprep.subr.mxu0 0.0
    %485 = vmatpush1.xpose.msra.mxu0 %v432
    %486 = vmatprep.subr.mxu0 0.0
    %487 = vmatpush1.xpose.msra.mxu0 %v435
    %488 = vmatprep.subr.mxu0 0.0
    %489 = vmatpush1.xpose.msra.mxu0 %v438
    %490 = vmatprep.subr.mxu0 0.0
    %491 = vmatpush1.xpose.msra.mxu0 0.0
    %492 = vmatprep.subr.mxu0 0.0
    %493 = vmatpush1.xpose.msra.mxu0 0.0
    %494 = vmatprep.subr.mxu0 0.0
    %495 = vmatpush1.xpose.msra.mxu0 0.0
    %496 = vmatprep.subr.mxu0 0.0
    %497 = vmatpush1.xpose.msra.mxu0 0.0
    %498 = vmatprep.subr.mxu0 0.0
    %499 = vmatpush1.xpose.msra.mxu0 0.0
    %500 = vmatprep.subr.mxu0 0.0
    %501 = vmatpush1.xpose.msra.mxu0 0.0
    %502 = vmatprep.subr.mxu0 0.0
    %503 = vmatpush1.xpose.msra.mxu0 0.0
    %504 = vmatprep.mubr.f32.mxu0 0.0
    %505 = vmatmul.mubr.f32.gmra.mrb[0].mxu0 %v363
    %v506 = vpop.f32.mrb[0].mxu0
    %v507 = vadd.f32 %v360, %v506
    %v508 = vpop.f32.mrb[0].mxu0
    %v509 = vadd.f32 %v360, %v508
    %510 = vdwg.mxu0
    %v513 = vcombine.low %v507, %v509
    %v515 = vunpack.c.l.s4 1966171168
    %v516 = vunpack.c.0.s8 %v515
    %v517 = vlaneseq
    %v518 = vshrl.u32 %v517, 7
    %v519 = vsub.s32 %v516, %v518
    %v520 = vrot.slane %v513, %v519
    %v522 = vunpack.c.l.s4 1966171168
    %v523 = vunpack.c.0.s8 %v522
    %v524 = vlaneseq
    %v525 = vshrl.u32 %v524, 7
    %v526 = vsub.s32 %v523, %v525
    %v527 = vrot.slane %v520, %v526
    %v529 = vlaneseq
    %vm530 = vcmp.ge.s32.totalorder %v529, 0
    %vm531 = vcmp.lt.s32.totalorder %v529, 200
    %vm532 = vmand %vm530, %vm531
    %533 = vst.msk [vmem:[#allocation3] sm:$0x3] %vm532, %v527
    // Predicated region
    $region22: #{custom_mlp_forward.1} parent=1 // pred_check
      _
    $region23: #{custom_mlp_forward.1} parent=1 // pred_check_branch
      %535 = sbr.rel (0) target = $region25
    $region24: #{custom_mlp_forward.1} parent=1 // pred_region
      %s537 = ssub.s32 32, 32
      %538 = vsyncadd [#allocation4], %s537
      %s540 = sshll.u32 [#allocation3], 4
      %s541 = int_to_ptr.vmem [resolvable:$true] %s540
      %543 = dma.vmem_to_hbm [thread:$0]  %s541, 32, %s5, [#allocation4]
    $region25: #{custom_mlp_forward.1} parent=1 // pred_fallthru
      _
    // Predicated region
    $region26: #{custom_mlp_forward.1} parent=1 // pred_check
      _
    $region27: #{custom_mlp_forward.1} parent=1 // pred_check_branch
      %545 = sbr.rel (0) target = $region29
    $region28: #{custom_mlp_forward.1} parent=1 // pred_region
      %546 = dma.done [#allocation4], 32
    $region29: #{custom_mlp_forward.1} parent=1 // pred_fallthru
      _
    %547 = vsyncpa [#allocation4], 1

</llo_original>
